<compile_context>
chip_gen: v7x
topology: tpu7x:2x2x1
jax: 0.10.0
libtpu: 0.0.40
codegen_flags: <defaults>
</compile_context>

<pallas_src>
import functools

import jax
import jax.numpy as jnp
import numpy as np
from jax.experimental import pallas as pl
from jax.experimental.pallas import tpu as pltpu


def _round_up(v, m):
    return (v + m - 1) // m * m


def _erf_approx(x):
    # Abramowitz & Stegun 7.1.26, |error| < 1.5e-7.  Elementwise only (f32).
    a1, a2, a3, a4, a5 = 0.254829592, -0.284496736, 1.421413741, -1.453152027, 1.061405429
    p = 0.3275911
    ax = jnp.abs(x)
    t = 1.0 / (1.0 + p * ax)
    poly = ((((a5 * t + a4) * t + a3) * t + a2) * t + a1) * t
    r = 1.0 - poly * jnp.exp(-ax * ax)
    return jnp.where(x >= 0, r, -r)


def _pooling_kernel(xp_ref, xc_ref, xn_ref, v_ref, b_ref, *rest,
                    scale, seq_len, tile_rows, coarse_w, compute_coarse):
    if compute_coarse:
        coarse_ref, fine_ref, cat_ref = rest
    else:
        fine_ref, cat_ref = rest

    S, T, TQ = scale, seq_len, tile_rows
    h = S // 2
    Dp = xc_ref.shape[-1]

    # Assemble [prev | cur | next] row tiles contiguously: 3 aligned full-slab
    # stores, so every shifted window below is a single vectorized slab load.
    cat_ref[0:TQ, :] = xp_ref[...]
    cat_ref[TQ:2 * TQ, :] = xc_ref[...]
    cat_ref[2 * TQ:3 * TQ, :] = xn_ref[...]

    row0 = pl.program_id(0) * TQ
    grow = row0 + jax.lax.broadcasted_iota(jnp.int32, (TQ, Dp), 0)   # global row id

    zacc = jnp.zeros((TQ, Dp), jnp.float32)
    cacc = jnp.zeros((TQ, Dp), jnp.float32)

    for n in range(S):                       # S is small (2..8): static unroll
        s = n - h + 1                        # window slot n of row i reads x[i + s]
        if n <= 2 * h - 1:
            base = TQ + s                    # offset inside the [prev|cur|next] scratch
            shifted = cat_ref[base:base + TQ, :]          # full-tile slab load
            valid = (grow >= h - 1) & (grow + s <= T - 1)  # interior rows, in-range
            win = jnp.where(valid, shifted, 0.0)
        else:                                # odd scale: last slot is always zero pad
            win = jnp.zeros((TQ, Dp), jnp.float32)

        if h >= 2 and n <= T - 1:
            # First h-1 global rows clamp the window start to 0 -> slot n is x[n]
            # (only tile 0 has such rows; the mask is all-false elsewhere).
            bval = cat_ref[TQ + n:TQ + n + 1, :]
            bok = (grow < h - 1) & (grow + h >= n)
            win = jnp.where(bok, jnp.broadcast_to(bval, (TQ, Dp)), win)

        # fc contraction, Kronecker structure exploited: z = sum_n win_n @ Veff[n]
        zacc = zacc + jnp.dot(win.astype(jnp.bfloat16), v_ref[n],
                              preferred_element_type=jnp.float32)
        # coarse pooling folded into static per-shift scalars (VPU, f32)
        if compute_coarse and abs(coarse_w[n]) > 1e-12:
            cacc = cacc + coarse_w[n] * win

    z = zacc + b_ref[...]
    gelu = 0.5 * z * (1.0 + _erf_approx(z * 0.7071067811865476))
    fine_ref[...] = gelu.astype(fine_ref.dtype)
    if compute_coarse:
        coarse_ref[...] = cacc.astype(coarse_ref.dtype)


def pooling_forward(x, v_eff, b_pad, *, coarse_w, scale, compute_coarse,
                    tile_rows=None):
    B, T, D = x.shape
    assert B == 1, "module hard-codes batch=1 in its .view(1, ...)"
    S = scale
    Dp = v_eff.shape[-1]                                   # lane-dense width
    if tile_rows is None:
        tile_rows = min(256, _round_up(max(T, S), 8))
    TQ = max(tile_rows, _round_up(S, 8))
    Tp = _round_up(T, TQ)
    nT = Tp // TQ

    # pad rows to a tile multiple and lanes to Dp (zeros); sliced off below.
    x2 = jnp.pad(x[0], ((0, Tp - T), (0, Dp - D)))

    kernel = functools.partial(
        _pooling_kernel, scale=S, seq_len=T, tile_rows=TQ,
        coarse_w=tuple(coarse_w), compute_coarse=compute_coarse)

    in_specs = [
        pl.BlockSpec((TQ, Dp), lambda i: (jnp.maximum(i - 1, 0), 0)),   # prev tile (halo)
        pl.BlockSpec((TQ, Dp), lambda i: (i, 0)),                        # current tile
        pl.BlockSpec((TQ, Dp), lambda i: (jnp.minimum(i + 1, nT - 1), 0)),  # next tile (halo)
        pl.BlockSpec((S, Dp, Dp), lambda i: (0, 0, 0)),                  # Veff (resident)
        pl.BlockSpec((1, Dp), lambda i: (0, 0)),                         # bias (resident)
    ]
    out_block = pl.BlockSpec((TQ, Dp), lambda i: (i, 0))
    if compute_coarse:
        out_shape = (jax.ShapeDtypeStruct((Tp, Dp), jnp.float32),
                     jax.ShapeDtypeStruct((Tp, Dp), jnp.float32))
        out_specs = (out_block, out_block)
    else:
        out_shape = jax.ShapeDtypeStruct((Tp, Dp), jnp.float32)
        out_specs = out_block

    res = pl.pallas_call(
        kernel,
        grid=(nT,),
        out_shape=out_shape,
        in_specs=in_specs,
        out_specs=out_specs,
        scratch_shapes=[pltpu.VMEM((3 * TQ, Dp), jnp.float32)],
        compiler_params=pltpu.CompilerParams(
            dimension_semantics=("parallel",),
            # explicit budget that fits v7x's 64 MiB VMEM as well as v5e/v6e
            vmem_limit_bytes=64 * 1024 * 1024),
    )(x2, x2, x2, v_eff, b_pad)

    if compute_coarse:
        coarse, fine = res
        return coarse[None, :T, :D], fine[None, :T, :D]
    return res[None, :T, :D]


class PoolingPallas:
    """JAX/Pallas counterpart of the torch `Pooling` module."""

    def __init__(self, scale, pooling_type, num_hidden, key):
        self.scale = scale[0]
        self.pooling_type = pooling_type
        self.num_hidden = num_hidden
        S, D = self.scale, num_hidden

        # A (S, K): maps the S window rows -> K coefficient rows.
        if pooling_type == 'fft':
            n = np.arange(S)
            A = np.cos(2.0 * np.pi * np.outer(n, n) / S).astype(np.float32)  # Re(DFT)
        elif pooling_type == 'dwt':
            K = S // 2
            A = np.zeros((S, K), dtype=np.float32)
            for j in range(K):                       # pywt 'db1' approximation coeffs
                A[2 * j, j] = A[2 * j + 1, j] = 1.0 / np.sqrt(2.0)
        else:                                        # 'flat-pooling'
            A = np.eye(S, dtype=np.float32)
        K = A.shape[1]
        in_dim = K * D

        # deterministic "nn.Linear"-style init (weight layout: (out, in))
        kw, kb = jax.random.split(key)
        bound = 1.0 / np.sqrt(in_dim)
        self.weight = jax.random.uniform(kw, (D, in_dim), jnp.float32, -bound, bound)
        self.bias = jax.random.uniform(kb, (D,), jnp.float32, -bound, bound)

        # ---- kernel-side parameters (Kronecker structure folded offline) ----
        Dp = _round_up(D, 128)                       # lane-dense output width
        W3 = self.weight.reshape(D, K, D)            # (out, k, in)
        veff = jnp.einsum('nk,oki->nio', jnp.asarray(A), W3)          # (S, D, D)
        veff = jnp.pad(veff, ((0, 0), (0, Dp - D), (0, Dp - D)))
        self.v_eff = veff.astype(jnp.bfloat16)       # bf16 MXU inputs, f32 accumulate
        self.b_pad = jnp.pad(self.bias, (0, Dp - D)).reshape(1, Dp)
        self.coarse_w = tuple(float(c) for c in A.mean(axis=1))        # static scalars

    def __call__(self, x, tile_rows=None):
        return pooling_forward(
            x, self.v_eff, self.b_pad,
            coarse_w=self.coarse_w, scale=self.scale,
            compute_coarse=(self.pooling_type != 'flat-pooling'),
            tile_rows=tile_rows)


# ----------------------- pure-JAX reference (torch semantics) ----------------
def ref_forward(module, x):
    S, D = module.scale, module.num_hidden
    B, T, _ = x.shape
    W, b = module.weight, module.bias
    segs = []
    for i in range(T):
        end = min(i + S // 2, T)
        start = max(0, i - S // 2 + 1)
        seg = x[:, start:end + 1, :]
        if seg.shape[1] < S:
            seg = jnp.pad(seg, ((0, 0), (0, S - seg.shape[1]), (0, 0)))
        segs.append(seg)

    def fc(z):
        return jax.nn.gelu(z @ W.T + b, approximate=False)

    if module.pooling_type == 'fft':
        ff = [jnp.fft.fft(s, axis=1).real for s in segs]
        coarse = jnp.stack([f.mean(axis=1) for f in ff], axis=1)
        fine = jnp.stack(ff, axis=1).reshape(1, T, S * D)
        return coarse, fc(fine)
    if module.pooling_type == 'dwt':
        cf = [(s[:, 0::2, :] + s[:, 1::2, :]) / np.sqrt(2.0) for s in segs]  # db1 cA
        coarse = jnp.stack([c.mean(axis=1) for c in cf], axis=1)
        fine = jnp.stack(cf, axis=1).reshape(1, T, S * D // 2)
        return coarse, fc(fine)
    fine = jnp.stack(segs, axis=1).reshape(1, T, S * D)
    return fc(fine)


if __name__ == "__main__":
    T, D = 8, 32                 # batch is 1 (module requirement), seq len, hidden
    scale = (4,)

    key = jax.random.PRNGKey(0)
    kx, kp = jax.random.split(key)
    x = jax.random.normal(kx, (1, T, D), dtype=jnp.float32)

    for idx, ptype in enumerate(['fft', 'dwt', 'flat-pooling']):
        mod = PoolingPallas(scale, ptype, D, jax.random.fold_in(kp, idx))
        out = jax.block_until_ready(mod(x))
        ref = ref_forward(mod, x)
        if ptype == 'flat-pooling':
            np.testing.assert_allclose(np.asarray(out), np.asarray(ref),
                                       rtol=2e-2, atol=2e-2)
        else:
            np.testing.assert_allclose(np.asarray(out[0]), np.asarray(ref[0]),
                                       rtol=2e-2, atol=2e-2)
            np.testing.assert_allclose(np.asarray(out[1]), np.asarray(ref[1]),
                                       rtol=2e-2, atol=2e-2)

    # multi-tile path: T=40 with an 8-row tile exercises the halo / grid logic.
    T2 = 40
    x2 = jax.random.normal(jax.random.fold_in(kx, 7), (1, T2, D), dtype=jnp.float32)
    mod = PoolingPallas(scale, 'fft', D, jax.random.fold_in(kp, 99))
    coarse, fine = jax.block_until_ready(mod(x2, tile_rows=8))
    rc, rf = ref_forward(mod, x2)
    np.testing.assert_allclose(np.asarray(coarse), np.asarray(rc), rtol=2e-2, atol=2e-2)
    np.testing.assert_allclose(np.asarray(fine), np.asarray(rf), rtol=2e-2, atol=2e-2)

    print("KERNEL_OK")
</pallas_src>

<mosaic_0001>
module attributes {stable_mosaic.version = 11 : i64} {
  func.func @_pooling_kernel(%arg0: i32, %arg1: memref<8x128xf32, #tpu.memory_space<vmem>>, %arg2: memref<8x128xf32, #tpu.memory_space<vmem>>, %arg3: memref<8x128xf32, #tpu.memory_space<vmem>>, %arg4: memref<4x128x128xbf16, #tpu.memory_space<vmem>>, %arg5: memref<1x128xf32, #tpu.memory_space<vmem>>, %arg6: memref<8x128xf32, #tpu.memory_space<vmem>>, %arg7: memref<8x128xf32, #tpu.memory_space<vmem>>, %arg8: memref<24x128xf32, #tpu.memory_space<vmem>>) attributes {dimension_semantics = [#tpu.dimension_semantics<parallel>], iteration_bounds = array<i64: 1>, scalar_prefetch = 0 : i64, scratch_operands = 1 : i64, tpu.core_type = #tpu.core_type<tc>, window_params = [{transform_indices = @transform_0, window_bounds = array<i64: 8, 128>}, {transform_indices = @transform_1, window_bounds = array<i64: 8, 128>}, {transform_indices = @transform_2, window_bounds = array<i64: 8, 128>}, {pipeline_mode = #tpu.pipeline_mode<synchronous>, transform_indices = @transform_3, window_bounds = array<i64: 4, 128, 128>}, {pipeline_mode = #tpu.pipeline_mode<synchronous>, transform_indices = @transform_4, window_bounds = array<i64: 1, 128>}, {transform_indices = @transform_5, window_bounds = array<i64: 8, 128>}, {transform_indices = @transform_6, window_bounds = array<i64: 8, 128>}]} {
    %c0 = arith.constant 0 : index
    %c0_0 = arith.constant 0 : index
    %0 = vector.load %arg1[%c0, %c0_0] : memref<8x128xf32, #tpu.memory_space<vmem>>, vector<8x128xf32>
    %c0_1 = arith.constant 0 : index
    %c0_2 = arith.constant 0 : index
    %1 = vector.load %arg8[%c0_1, %c0_2] : memref<24x128xf32, #tpu.memory_space<vmem>>, vector<8x128xf32>
    tpu.vector_store %arg8[%c0_1, %c0_2], %0 {strides = array<i32>} : memref<24x128xf32, #tpu.memory_space<vmem>>, vector<8x128xf32>,
    %c0_3 = arith.constant 0 : index
    %c0_4 = arith.constant 0 : index
    %2 = vector.load %arg2[%c0_3, %c0_4] : memref<8x128xf32, #tpu.memory_space<vmem>>, vector<8x128xf32>
    %c8 = arith.constant 8 : index
    %c0_5 = arith.constant 0 : index
    %3 = vector.load %arg8[%c8, %c0_5] : memref<24x128xf32, #tpu.memory_space<vmem>>, vector<8x128xf32>
    tpu.vector_store %arg8[%c8, %c0_5], %2 {strides = array<i32>} : memref<24x128xf32, #tpu.memory_space<vmem>>, vector<8x128xf32>,
    %c0_6 = arith.constant 0 : index
    %c0_7 = arith.constant 0 : index
    %4 = vector.load %arg3[%c0_6, %c0_7] : memref<8x128xf32, #tpu.memory_space<vmem>>, vector<8x128xf32>
    %c16 = arith.constant 16 : index
    %c0_8 = arith.constant 0 : index
    %5 = vector.load %arg8[%c16, %c0_8] : memref<24x128xf32, #tpu.memory_space<vmem>>, vector<8x128xf32>
    tpu.vector_store %arg8[%c16, %c0_8], %4 {strides = array<i32>} : memref<24x128xf32, #tpu.memory_space<vmem>>, vector<8x128xf32>,
    %c8_i32 = arith.constant 8 : i32
    %6 = arith.muli %arg0, %c8_i32 : i32
    %7 = tpu.iota {dimensions = array<i32: 0>} : vector<8x128xi32>
    %8 = vector.broadcast %6 : i32 to vector<8x128xi32>
    %9 = arith.addi %8, %7 : vector<8x128xi32>
    %cst = arith.constant 0.000000e+00 : f32
    %10 = vector.broadcast %cst : f32 to vector<8x128xf32>
    %cst_9 = arith.constant 0.000000e+00 : f32
    %11 = vector.broadcast %cst_9 : f32 to vector<8x128xf32>
    %c7 = arith.constant 7 : index
    %c0_10 = arith.constant 0 : index
    %12 = vector.load %arg8[%c7, %c0_10] : memref<24x128xf32, #tpu.memory_space<vmem>>, vector<8x128xf32>
    %c1_i32 = arith.constant 1 : i32
    %13 = vector.broadcast %c1_i32 : i32 to vector<8x128xi32>
    %14 = arith.cmpi sge, %9, %13 : vector<8x128xi32>
    %c-1_i32 = arith.constant -1 : i32
    %15 = vector.broadcast %c-1_i32 : i32 to vector<8x128xi32>
    %16 = arith.addi %9, %15 : vector<8x128xi32>
    %c7_i32 = arith.constant 7 : i32
    %17 = vector.broadcast %c7_i32 : i32 to vector<8x128xi32>
    %18 = arith.cmpi sle, %16, %17 : vector<8x128xi32>
    %19 = arith.andi %14, %18 : vector<8x128xi1>
    %cst_11 = arith.constant 0.000000e+00 : f32
    %20 = vector.broadcast %cst_11 : f32 to vector<8x128xf32>
    %21 = arith.select %19, %12, %20 : vector<8x128xi1>, vector<8x128xf32>
    %c8_12 = arith.constant 8 : index
    %c0_13 = arith.constant 0 : index
    %22 = vector.load %arg8[%c8_12, %c0_13] : memref<24x128xf32, #tpu.memory_space<vmem>>, vector<1x128xf32>
    %c1_i32_14 = arith.constant 1 : i32
    %23 = vector.broadcast %c1_i32_14 : i32 to vector<8x128xi32>
    %24 = arith.cmpi slt, %9, %23 : vector<8x128xi32>
    %c2_i32 = arith.constant 2 : i32
    %25 = vector.broadcast %c2_i32 : i32 to vector<8x128xi32>
    %26 = arith.addi %9, %25 : vector<8x128xi32>
    %c0_i32 = arith.constant 0 : i32
    %27 = vector.broadcast %c0_i32 : i32 to vector<8x128xi32>
    %28 = arith.cmpi sge, %26, %27 : vector<8x128xi32>
    %29 = arith.andi %24, %28 : vector<8x128xi1>
    %30 = vector.shape_cast %22 : vector<1x128xf32> to vector<1x128xf32>
    %31 = vector.broadcast %30 : vector<1x128xf32> to vector<8x128xf32>
    %32 = arith.select %29, %31, %21 : vector<8x128xi1>, vector<8x128xf32>
    %33 = arith.truncf %32 : vector<8x128xf32> to vector<8x128xbf16>
    %c0_15 = arith.constant 0 : index
    %c0_16 = arith.constant 0 : index
    %c0_17 = arith.constant 0 : index
    %34 = vector.load %arg4[%c0_15, %c0_16, %c0_17] : memref<4x128x128xbf16, #tpu.memory_space<vmem>>, vector<1x128x128xbf16>
    %35 = vector.shape_cast %34 : vector<1x128x128xbf16> to vector<128x128xbf16>
    %cst_18 = arith.constant dense<0.000000e+00> : vector<8x128xf32>
    %36 = tpu.matmul %33, %35, %cst_18 {dimension_numbers = #tpu.dot_dimension_numbers<[1], [0], [0], [1], [0, 0, 1, 1], [], []>} : vector<8x128xbf16>, vector<128x128xbf16>, vector<8x128xf32> -> vector<8x128xf32>
    %37 = arith.addf %10, %36 : vector<8x128xf32>
    %cst_19 = arith.constant 1.000000e+00 : f32
    %38 = vector.broadcast %cst_19 : f32 to vector<8x128xf32>
    %39 = arith.mulf %38, %32 : vector<8x128xf32>
    %40 = arith.addf %11, %39 : vector<8x128xf32>
    %c8_20 = arith.constant 8 : index
    %c0_21 = arith.constant 0 : index
    %41 = vector.load %arg8[%c8_20, %c0_21] : memref<24x128xf32, #tpu.memory_space<vmem>>, vector<8x128xf32>
    %c1_i32_22 = arith.constant 1 : i32
    %42 = vector.broadcast %c1_i32_22 : i32 to vector<8x128xi32>
    %43 = arith.cmpi sge, %9, %42 : vector<8x128xi32>
    %c0_i32_23 = arith.constant 0 : i32
    %44 = vector.broadcast %c0_i32_23 : i32 to vector<8x128xi32>
    %45 = arith.addi %9, %44 : vector<8x128xi32>
    %c7_i32_24 = arith.constant 7 : i32
    %46 = vector.broadcast %c7_i32_24 : i32 to vector<8x128xi32>
    %47 = arith.cmpi sle, %45, %46 : vector<8x128xi32>
    %48 = arith.andi %43, %47 : vector<8x128xi1>
    %cst_25 = arith.constant 0.000000e+00 : f32
    %49 = vector.broadcast %cst_25 : f32 to vector<8x128xf32>
    %50 = arith.select %48, %41, %49 : vector<8x128xi1>, vector<8x128xf32>
    %c9 = arith.constant 9 : index
    %c0_26 = arith.constant 0 : index
    %51 = vector.load %arg8[%c9, %c0_26] : memref<24x128xf32, #tpu.memory_space<vmem>>, vector<1x128xf32>
    %c1_i32_27 = arith.constant 1 : i32
    %52 = vector.broadcast %c1_i32_27 : i32 to vector<8x128xi32>
    %53 = arith.cmpi slt, %9, %52 : vector<8x128xi32>
    %c2_i32_28 = arith.constant 2 : i32
    %54 = vector.broadcast %c2_i32_28 : i32 to vector<8x128xi32>
    %55 = arith.addi %9, %54 : vector<8x128xi32>
    %c1_i32_29 = arith.constant 1 : i32
    %56 = vector.broadcast %c1_i32_29 : i32 to vector<8x128xi32>
    %57 = arith.cmpi sge, %55, %56 : vector<8x128xi32>
    %58 = arith.andi %53, %57 : vector<8x128xi1>
    %59 = vector.shape_cast %51 : vector<1x128xf32> to vector<1x128xf32>
    %60 = vector.broadcast %59 : vector<1x128xf32> to vector<8x128xf32>
    %61 = arith.select %58, %60, %50 : vector<8x128xi1>, vector<8x128xf32>
    %62 = arith.truncf %61 : vector<8x128xf32> to vector<8x128xbf16>
    %c1 = arith.constant 1 : index
    %c0_30 = arith.constant 0 : index
    %c0_31 = arith.constant 0 : index
    %63 = vector.load %arg4[%c1, %c0_30, %c0_31] : memref<4x128x128xbf16, #tpu.memory_space<vmem>>, vector<1x128x128xbf16>
    %64 = vector.shape_cast %63 : vector<1x128x128xbf16> to vector<128x128xbf16>
    %cst_32 = arith.constant dense<0.000000e+00> : vector<8x128xf32>
    %65 = tpu.matmul %62, %64, %cst_32 {dimension_numbers = #tpu.dot_dimension_numbers<[1], [0], [0], [1], [0, 0, 1, 1], [], []>} : vector<8x128xbf16>, vector<128x128xbf16>, vector<8x128xf32> -> vector<8x128xf32>
    %66 = arith.addf %37, %65 : vector<8x128xf32>
    %c9_33 = arith.constant 9 : index
    %c0_34 = arith.constant 0 : index
    %67 = vector.load %arg8[%c9_33, %c0_34] : memref<24x128xf32, #tpu.memory_space<vmem>>, vector<8x128xf32>
    %c1_i32_35 = arith.constant 1 : i32
    %68 = vector.broadcast %c1_i32_35 : i32 to vector<8x128xi32>
    %69 = arith.cmpi sge, %9, %68 : vector<8x128xi32>
    %c1_i32_36 = arith.constant 1 : i32
    %70 = vector.broadcast %c1_i32_36 : i32 to vector<8x128xi32>
    %71 = arith.addi %9, %70 : vector<8x128xi32>
    %c7_i32_37 = arith.constant 7 : i32
    %72 = vector.broadcast %c7_i32_37 : i32 to vector<8x128xi32>
    %73 = arith.cmpi sle, %71, %72 : vector<8x128xi32>
    %74 = arith.andi %69, %73 : vector<8x128xi1>
    %cst_38 = arith.constant 0.000000e+00 : f32
    %75 = vector.broadcast %cst_38 : f32 to vector<8x128xf32>
    %76 = arith.select %74, %67, %75 : vector<8x128xi1>, vector<8x128xf32>
    %c10 = arith.constant 10 : index
    %c0_39 = arith.constant 0 : index
    %77 = vector.load %arg8[%c10, %c0_39] : memref<24x128xf32, #tpu.memory_space<vmem>>, vector<1x128xf32>
    %c1_i32_40 = arith.constant 1 : i32
    %78 = vector.broadcast %c1_i32_40 : i32 to vector<8x128xi32>
    %79 = arith.cmpi slt, %9, %78 : vector<8x128xi32>
    %c2_i32_41 = arith.constant 2 : i32
    %80 = vector.broadcast %c2_i32_41 : i32 to vector<8x128xi32>
    %81 = arith.addi %9, %80 : vector<8x128xi32>
    %c2_i32_42 = arith.constant 2 : i32
    %82 = vector.broadcast %c2_i32_42 : i32 to vector<8x128xi32>
    %83 = arith.cmpi sge, %81, %82 : vector<8x128xi32>
    %84 = arith.andi %79, %83 : vector<8x128xi1>
    %85 = vector.shape_cast %77 : vector<1x128xf32> to vector<1x128xf32>
    %86 = vector.broadcast %85 : vector<1x128xf32> to vector<8x128xf32>
    %87 = arith.select %84, %86, %76 : vector<8x128xi1>, vector<8x128xf32>
    %88 = arith.truncf %87 : vector<8x128xf32> to vector<8x128xbf16>
    %c2 = arith.constant 2 : index
    %c0_43 = arith.constant 0 : index
    %c0_44 = arith.constant 0 : index
    %89 = vector.load %arg4[%c2, %c0_43, %c0_44] : memref<4x128x128xbf16, #tpu.memory_space<vmem>>, vector<1x128x128xbf16>
    %90 = vector.shape_cast %89 : vector<1x128x128xbf16> to vector<128x128xbf16>
    %cst_45 = arith.constant dense<0.000000e+00> : vector<8x128xf32>
    %91 = tpu.matmul %88, %90, %cst_45 {dimension_numbers = #tpu.dot_dimension_numbers<[1], [0], [0], [1], [0, 0, 1, 1], [], []>} : vector<8x128xbf16>, vector<128x128xbf16>, vector<8x128xf32> -> vector<8x128xf32>
    %92 = arith.addf %66, %91 : vector<8x128xf32>
    %c10_46 = arith.constant 10 : index
    %c0_47 = arith.constant 0 : index
    %93 = vector.load %arg8[%c10_46, %c0_47] : memref<24x128xf32, #tpu.memory_space<vmem>>, vector<8x128xf32>
    %c1_i32_48 = arith.constant 1 : i32
    %94 = vector.broadcast %c1_i32_48 : i32 to vector<8x128xi32>
    %95 = arith.cmpi sge, %9, %94 : vector<8x128xi32>
    %c2_i32_49 = arith.constant 2 : i32
    %96 = vector.broadcast %c2_i32_49 : i32 to vector<8x128xi32>
    %97 = arith.addi %9, %96 : vector<8x128xi32>
    %c7_i32_50 = arith.constant 7 : i32
    %98 = vector.broadcast %c7_i32_50 : i32 to vector<8x128xi32>
    %99 = arith.cmpi sle, %97, %98 : vector<8x128xi32>
    %100 = arith.andi %95, %99 : vector<8x128xi1>
    %cst_51 = arith.constant 0.000000e+00 : f32
    %101 = vector.broadcast %cst_51 : f32 to vector<8x128xf32>
    %102 = arith.select %100, %93, %101 : vector<8x128xi1>, vector<8x128xf32>
    %c11 = arith.constant 11 : index
    %c0_52 = arith.constant 0 : index
    %103 = vector.load %arg8[%c11, %c0_52] : memref<24x128xf32, #tpu.memory_space<vmem>>, vector<1x128xf32>
    %c1_i32_53 = arith.constant 1 : i32
    %104 = vector.broadcast %c1_i32_53 : i32 to vector<8x128xi32>
    %105 = arith.cmpi slt, %9, %104 : vector<8x128xi32>
    %c2_i32_54 = arith.constant 2 : i32
    %106 = vector.broadcast %c2_i32_54 : i32 to vector<8x128xi32>
    %107 = arith.addi %9, %106 : vector<8x128xi32>
    %c3_i32 = arith.constant 3 : i32
    %108 = vector.broadcast %c3_i32 : i32 to vector<8x128xi32>
    %109 = arith.cmpi sge, %107, %108 : vector<8x128xi32>
    %110 = arith.andi %105, %109 : vector<8x128xi1>
    %111 = vector.shape_cast %103 : vector<1x128xf32> to vector<1x128xf32>
    %112 = vector.broadcast %111 : vector<1x128xf32> to vector<8x128xf32>
    %113 = arith.select %110, %112, %102 : vector<8x128xi1>, vector<8x128xf32>
    %114 = arith.truncf %113 : vector<8x128xf32> to vector<8x128xbf16>
    %c3 = arith.constant 3 : index
    %c0_55 = arith.constant 0 : index
    %c0_56 = arith.constant 0 : index
    %115 = vector.load %arg4[%c3, %c0_55, %c0_56] : memref<4x128x128xbf16, #tpu.memory_space<vmem>>, vector<1x128x128xbf16>
    %116 = vector.shape_cast %115 : vector<1x128x128xbf16> to vector<128x128xbf16>
    %cst_57 = arith.constant dense<0.000000e+00> : vector<8x128xf32>
    %117 = tpu.matmul %114, %116, %cst_57 {dimension_numbers = #tpu.dot_dimension_numbers<[1], [0], [0], [1], [0, 0, 1, 1], [], []>} : vector<8x128xbf16>, vector<128x128xbf16>, vector<8x128xf32> -> vector<8x128xf32>
    %118 = arith.addf %92, %117 : vector<8x128xf32>
    %c0_58 = arith.constant 0 : index
    %c0_59 = arith.constant 0 : index
    %119 = vector.load %arg5[%c0_58, %c0_59] : memref<1x128xf32, #tpu.memory_space<vmem>>, vector<1x128xf32>
    %120 = vector.broadcast %119 : vector<1x128xf32> to vector<8x128xf32>
    %121 = arith.addf %118, %120 : vector<8x128xf32>
    %cst_60 = arith.constant 5.000000e-01 : f32
    %122 = vector.broadcast %cst_60 : f32 to vector<8x128xf32>
    %123 = arith.mulf %122, %121 : vector<8x128xf32>
    %cst_61 = arith.constant 0.707106769 : f32
    %124 = vector.broadcast %cst_61 : f32 to vector<8x128xf32>
    %125 = arith.mulf %121, %124 : vector<8x128xf32>
    %126 = math.absf %125 : vector<8x128xf32>
    %cst_62 = arith.constant 0.327591091 : f32
    %127 = vector.broadcast %cst_62 : f32 to vector<8x128xf32>
    %128 = arith.mulf %127, %126 : vector<8x128xf32>
    %cst_63 = arith.constant 1.000000e+00 : f32
    %129 = vector.broadcast %cst_63 : f32 to vector<8x128xf32>
    %130 = arith.addf %129, %128 : vector<8x128xf32>
    %cst_64 = arith.constant 1.000000e+00 : f32
    %131 = vector.broadcast %cst_64 : f32 to vector<8x128xf32>
    %132 = arith.divf %131, %130 : vector<8x128xf32>
    %cst_65 = arith.constant 1.06140542 : f32
    %133 = vector.broadcast %cst_65 : f32 to vector<8x128xf32>
    %134 = arith.mulf %133, %132 : vector<8x128xf32>
    %cst_66 = arith.constant -1.45315206 : f32
    %135 = vector.broadcast %cst_66 : f32 to vector<8x128xf32>
    %136 = arith.addf %134, %135 : vector<8x128xf32>
    %137 = arith.mulf %136, %132 : vector<8x128xf32>
    %cst_67 = arith.constant 1.42141378 : f32
    %138 = vector.broadcast %cst_67 : f32 to vector<8x128xf32>
    %139 = arith.addf %137, %138 : vector<8x128xf32>
    %140 = arith.mulf %139, %132 : vector<8x128xf32>
    %cst_68 = arith.constant -0.284496725 : f32
    %141 = vector.broadcast %cst_68 : f32 to vector<8x128xf32>
    %142 = arith.addf %140, %141 : vector<8x128xf32>
    %143 = arith.mulf %142, %132 : vector<8x128xf32>
    %cst_69 = arith.constant 0.254829586 : f32
    %144 = vector.broadcast %cst_69 : f32 to vector<8x128xf32>
    %145 = arith.addf %143, %144 : vector<8x128xf32>
    %146 = arith.mulf %145, %132 : vector<8x128xf32>
    %cst_70 = arith.constant 0.000000e+00 : f32
    %147 = vector.broadcast %cst_70 : f32 to vector<8x128xf32>
    %148 = arith.subf %147, %126 : vector<8x128xf32>
    %149 = arith.mulf %148, %126 : vector<8x128xf32>
    %150 = math.exp %149 : vector<8x128xf32>
    %151 = arith.mulf %146, %150 : vector<8x128xf32>
    %cst_71 = arith.constant 1.000000e+00 : f32
    %152 = vector.broadcast %cst_71 : f32 to vector<8x128xf32>
    %153 = arith.subf %152, %151 : vector<8x128xf32>
    %cst_72 = arith.constant 0.000000e+00 : f32
    %154 = vector.broadcast %cst_72 : f32 to vector<8x128xf32>
    %155 = arith.cmpf oge, %125, %154 : vector<8x128xf32>
    %cst_73 = arith.constant 0.000000e+00 : f32
    %156 = vector.broadcast %cst_73 : f32 to vector<8x128xf32>
    %157 = arith.subf %156, %153 : vector<8x128xf32>
    %158 = arith.select %155, %153, %157 : vector<8x128xi1>, vector<8x128xf32>
    %cst_74 = arith.constant 1.000000e+00 : f32
    %159 = vector.broadcast %cst_74 : f32 to vector<8x128xf32>
    %160 = arith.addf %159, %158 : vector<8x128xf32>
    %161 = arith.mulf %123, %160 : vector<8x128xf32>
    %c0_75 = arith.constant 0 : index
    %c0_76 = arith.constant 0 : index
    %162 = vector.load %arg7[%c0_75, %c0_76] : memref<8x128xf32, #tpu.memory_space<vmem>>, vector<8x128xf32>
    tpu.vector_store %arg7[%c0_75, %c0_76], %161 {strides = array<i32>} : memref<8x128xf32, #tpu.memory_space<vmem>>, vector<8x128xf32>,
    %c0_77 = arith.constant 0 : index
    %c0_78 = arith.constant 0 : index
    %163 = vector.load %arg6[%c0_77, %c0_78] : memref<8x128xf32, #tpu.memory_space<vmem>>, vector<8x128xf32>
    tpu.vector_store %arg6[%c0_77, %c0_78], %40 {strides = array<i32>} : memref<8x128xf32, #tpu.memory_space<vmem>>, vector<8x128xf32>,
    return
  }
  func.func @transform_0(%arg0: i32) -> (i32, i32) {
    %c1_i32 = arith.constant 1 : i32
    %0 = arith.subi %arg0, %c1_i32 : i32
    %c0_i32 = arith.constant 0 : i32
    %1 = arith.maxsi %0, %c0_i32 : i32
    %c0_i32_0 = arith.constant 0 : i32
    %c0_i32_1 = arith.constant 0 : i32
    return %1, %c0_i32_0 : i32, i32
  }
  func.func @transform_1(%arg0: i32) -> (i32, i32) {
    %c0_i32 = arith.constant 0 : i32
    %c0_i32_0 = arith.constant 0 : i32
    return %arg0, %c0_i32 : i32, i32
  }
  func.func @transform_2(%arg0: i32) -> (i32, i32) {
    %c1_i32 = arith.constant 1 : i32
    %0 = arith.addi %arg0, %c1_i32 : i32
    %c0_i32 = arith.constant 0 : i32
    %1 = arith.minsi %0, %c0_i32 : i32
    %c0_i32_0 = arith.constant 0 : i32
    %c0_i32_1 = arith.constant 0 : i32
    return %1, %c0_i32_0 : i32, i32
  }
  func.func @transform_3(%arg0: i32) -> (i32, i32, i32) {
    %c0_i32 = arith.constant 0 : i32
    %c0_i32_0 = arith.constant 0 : i32
    %c0_i32_1 = arith.constant 0 : i32
    %c0_i32_2 = arith.constant 0 : i32
    return %c0_i32, %c0_i32_0, %c0_i32_1 : i32, i32, i32
  }
  func.func @transform_4(%arg0: i32) -> (i32, i32) {
    %c0_i32 = arith.constant 0 : i32
    %c0_i32_0 = arith.constant 0 : i32
    %c0_i32_1 = arith.constant 0 : i32
    return %c0_i32, %c0_i32_0 : i32, i32
  }
  func.func @transform_5(%arg0: i32) -> (i32, i32) {
    %c0_i32 = arith.constant 0 : i32
    %c0_i32_0 = arith.constant 0 : i32
    return %arg0, %c0_i32 : i32, i32
  }
  func.func @transform_6(%arg0: i32) -> (i32, i32) {
    %c0_i32 = arith.constant 0 : i32
    %c0_i32_0 = arith.constant 0 : i32
    return %arg0, %c0_i32 : i32, i32
  }
}

</mosaic_0001>

<llo_original>
// kernel: tpu_custom_call.1
$region0: #{tpu_custom_call.1}
  #allocation0 [shape = 'u32[]', space=smem, size = 0x4, offset = 0x4, fixed_abs, tag = 'smem constant byte address 0x4 - core index']
  #allocation1 [shape = 'u32[144,128]{1,0:T(1,128)}', space=vmem, size = 0x12000, scoped, tag = 'internal scratch']
  #allocation2 [shape = 'f32[24,128]{1,0:T(8,128)}', space=vmem, size = 0x3000, scoped, tag = 'scratch operand']
  %s0 = inlined_call_operand.hbm [shape: f32[8,128], index: 0, kind: input, shape index: {}]
  %s1 = inlined_call_operand.hbm [shape: f32[8,128], index: 1, kind: input, shape index: {}]
  %s2 = inlined_call_operand.hbm [shape: f32[8,128], index: 2, kind: input, shape index: {}]
  %s3 = inlined_call_operand.hbm [shape: bf16[4,128,128], index: 3, kind: input, shape index: {}]
  %s4 = inlined_call_operand.hbm [shape: f32[1,128], index: 4, kind: input, shape index: {}]
  %s5 = inlined_call_operand.hbm [shape: f32[8,128], index: 5, kind: output, shape index: {0}]
  %s6 = inlined_call_operand.hbm [shape: f32[8,128], index: 6, kind: output, shape index: {1}]
  %7 = xla_tuple %s5, %s6
  %s8 = sld [smem:[#allocation0]]
  $region58: #{tpu_custom_call.1} parent=0
    _
  %s10 = ssub.s32 1, %s8
  %s11 = scalar_select 0, %s10, %s8
  $region1: #{tpu_custom_call.1} parent=0
    #allocation3 [shape = 'u8[4096]{0}', space=vmem, size = 0x1000, scoped, tag = 'input window, operand 0, single buffered']
    #allocation4 [shape = 's32[1]{0}', space=sflag, size = 0x4, scoped, tag = 'scoped memory for tpu_custom_call.1']
    #allocation5 [shape = 's32[1]{0}', space=sflag, size = 0x4, scoped, tag = 'scoped memory for tpu_custom_call.1']
    #allocation6 [shape = 'u8[4096]{0}', space=vmem, size = 0x1000, scoped, tag = 'input window, operand 1, single buffered']
    #allocation7 [shape = 's32[1]{0}', space=sflag, size = 0x4, scoped, tag = 'scoped memory for tpu_custom_call.1']
    #allocation8 [shape = 'u8[4096]{0}', space=vmem, size = 0x1000, scoped, tag = 'input window, operand 2, single buffered']
    #allocation9 [shape = 'u8[131072]{0}', space=vmem, size = 0x20000, scoped, tag = 'input window, operand 3, single buffered']
    #allocation10 [shape = 's32[1]{0}', space=sflag, size = 0x4, scoped, tag = 'scoped memory for tpu_custom_call.1']
    #allocation11 [shape = 'u8[512]{0}', space=vmem, size = 0x400, scoped, tag = 'input window, operand 4, single buffered']
    #allocation12 [shape = 'u8[4096]{0}', space=vmem, size = 0x1000, scoped, tag = 'output window, operand 0, single buffered']
    #allocation13 [shape = 'u8[4096]{0}', space=vmem, size = 0x1000, scoped, tag = 'output window, operand 1, single buffered']
    #allocation14 [shape = 's32[1]{0}', space=sflag, size = 0x4, scoped, tag = 'scoped memory for tpu_custom_call.1']
    %12 = vsyncpa [#allocation4], 0
    %13 = vsyncpa [#allocation7], 0
    %14 = vsyncpa [#allocation10], 0
    %15 = vsyncpa [#allocation5], 0
    %16 = vsyncpa [#allocation14], 0
    // Predicated region
    $region2: #{tpu_custom_call.1} parent=1 // pred_check
      _
    $region3: #{tpu_custom_call.1} parent=1 // pred_check_branch
      %18 = sbr.rel (0) target = $region5
    $region4: #{tpu_custom_call.1} parent=1 // pred_region
      %s19 = ssub.s32 0, 1
      %p20 = scmp.gt.s32.totalorder %s19, 0
      %s21 = scalar_select %p20, %s19, 0
      %s23 = ssub.s32 128, 128
      %24 = vsyncadd [#allocation4], %s23
      %s25 = smul.addr %s21, 128
      %s26 = scalar_lea.hbm %s0, %s25
      %s28 = sshll.u32 [#allocation3], 4
      %s29 = int_to_ptr.vmem [resolvable:$true] %s28
      %31 = dma.hbm_to_vmem [thread:$0]  %s26, 128, %s29, [#allocation4]
    $region5: #{tpu_custom_call.1} parent=1 // pred_fallthru
      _
    // Predicated region
    $region6: #{tpu_custom_call.1} parent=1 // pred_check
      _
    $region7: #{tpu_custom_call.1} parent=1 // pred_check_branch
      %33 = sbr.rel (0) target = $region9
    $region8: #{tpu_custom_call.1} parent=1 // pred_region
      %s35 = ssub.s32 128, 128
      %36 = vsyncadd [#allocation7], %s35
      %s38 = sshll.u32 [#allocation6], 4
      %s39 = int_to_ptr.vmem [resolvable:$true] %s38
      %41 = dma.hbm_to_vmem [thread:$0]  %s1, 128, %s39, [#allocation7]
    $region9: #{tpu_custom_call.1} parent=1 // pred_fallthru
      _
    // Predicated region
    $region10: #{tpu_custom_call.1} parent=1 // pred_check
      _
    $region11: #{tpu_custom_call.1} parent=1 // pred_check_branch
      %43 = sbr.rel (0) target = $region13
    $region12: #{tpu_custom_call.1} parent=1 // pred_region
      %s44 = sadd.s32 0, 1
      %p45 = scmp.lt.s32.totalorder %s44, 0
      %s46 = scalar_select %p45, %s44, 0
      %s48 = ssub.s32 128, 128
      %49 = vsyncadd [#allocation7], %s48
      %s50 = smul.addr %s46, 128
      %s51 = scalar_lea.hbm %s2, %s50
      %s53 = sshll.u32 [#allocation8], 4
      %s54 = int_to_ptr.vmem [resolvable:$true] %s53
      %56 = dma.hbm_to_vmem [thread:$0]  %s51, 128, %s54, [#allocation7]
    $region13: #{tpu_custom_call.1} parent=1 // pred_fallthru
      _
    // Predicated region
    $region14: #{tpu_custom_call.1} parent=1 // pred_check
      _
    $region15: #{tpu_custom_call.1} parent=1 // pred_check_branch
      %58 = sbr.rel (0) target = $region17
    $region16: #{tpu_custom_call.1} parent=1 // pred_region
      %s60 = ssub.s32 4096, 4096
      %61 = vsyncadd [#allocation10], %s60
      %s62 = sshll.u32 [#allocation9], 4
      %s63 = int_to_ptr.vmem [resolvable:$true] %s62
      %68 = dma.hbm_to_vmem [thread:$0]  %s3, 4096, %s63, [#allocation10], 64, 64, 4
    $region17: #{tpu_custom_call.1} parent=1 // pred_fallthru
      _
    // Predicated region
    $region18: #{tpu_custom_call.1} parent=1 // pred_check
      _
    $region19: #{tpu_custom_call.1} parent=1 // pred_check_branch
      %70 = sbr.rel (0) target = $region21
    $region20: #{tpu_custom_call.1} parent=1 // pred_region
      %s72 = ssub.s32 16, 16
      %73 = vsyncadd [#allocation10], %s72
      %s75 = sshll.u32 [#allocation11], 4
      %s76 = int_to_ptr.vmem [resolvable:$true] %s75
      %78 = dma.hbm_to_vmem [thread:$0]  %s4, 16, %s76, [#allocation10]
    $region21: #{tpu_custom_call.1} parent=1 // pred_fallthru
      _
    // Predicated region
    $region22: #{tpu_custom_call.1} parent=1 // pred_check
      _
    $region23: #{tpu_custom_call.1} parent=1 // pred_check_branch
      %80 = sbr.rel (0) target = $region25
    $region24: #{tpu_custom_call.1} parent=1 // pred_region
      %81 = dma.done [#allocation4], 128
    $region25: #{tpu_custom_call.1} parent=1 // pred_fallthru
      _
    // Predicated region
    $region26: #{tpu_custom_call.1} parent=1 // pred_check
      _
    $region27: #{tpu_custom_call.1} parent=1 // pred_check_branch
      %83 = sbr.rel (0) target = $region29
    $region28: #{tpu_custom_call.1} parent=1 // pred_region
      %84 = dma.done [#allocation7], 128
    $region29: #{tpu_custom_call.1} parent=1 // pred_fallthru
      _
    // Predicated region
    $region30: #{tpu_custom_call.1} parent=1 // pred_check
      _
    $region31: #{tpu_custom_call.1} parent=1 // pred_check_branch
      %86 = sbr.rel (0) target = $region33
    $region32: #{tpu_custom_call.1} parent=1 // pred_region
      %87 = dma.done [#allocation7], 128
    $region33: #{tpu_custom_call.1} parent=1 // pred_fallthru
      _
    // Predicated region
    $region34: #{tpu_custom_call.1} parent=1 // pred_check
      _
    $region35: #{tpu_custom_call.1} parent=1 // pred_check_branch
      %89 = sbr.rel (0) target = $region37
    $region36: #{tpu_custom_call.1} parent=1 // pred_region
      %90 = dma.done [#allocation10], 4096
    $region37: #{tpu_custom_call.1} parent=1 // pred_fallthru
      _
    // Predicated region
    $region38: #{tpu_custom_call.1} parent=1 // pred_check
      _
    $region39: #{tpu_custom_call.1} parent=1 // pred_check_branch
      %92 = sbr.rel (0) target = $region41
    $region40: #{tpu_custom_call.1} parent=1 // pred_region
      %93 = dma.done [#allocation10], 16
    $region41: #{tpu_custom_call.1} parent=1 // pred_fallthru
      _
    %s94 = ssub.s32 0, 1
    %p95 = scmp.gt.s32.totalorder %s94, 0
    %s96 = scalar_select %p95, %s94, 0
    %s97 = sadd.s32 0, 1
    %p98 = scmp.lt.s32.totalorder %s97, 0
    %s99 = scalar_select %p98, %s97, 0
    %v101 = vld [vmem:[#allocation3] sm:$0xff]
    %102 = vst [vmem:[#allocation2] sm:$0xff] %v101
    %v103 = vld [vmem:[#allocation6] sm:$0xff]
    %104 = vst [vmem:[#allocation2 + $0x8] sm:$0xff] %v103
    %v105 = vld [vmem:[#allocation8] sm:$0xff]
    %106 = vst [vmem:[#allocation2 + $0x10] sm:$0xff] %v105
    %s107 = smul.u32 0, 8
    %v108 = vlaneseq
    %v109 = vshrl.u32 %v108, 7
    %v110 = vstv %s107
    %v111 = vadd.s32 %v110, %v109
    %v112 = vld [vmem:[#allocation2 + $0x7] sm:$0xff]
    %vm113 = vcmp.ge.s32.totalorder %v111, 1
    %v114 = vadd.s32 %v111, 4294967295
    %vm115 = vcmp.le.s32.totalorder %v114, 7
    %vm116 = vmand %vm113, %vm115
    %v117 = vsel %vm116, %v112, 0.0
    %v118 = vld [vmem:[#allocation2 + $0x8] sm:$0x1]
    %vm119 = vcmp.lt.s32.totalorder %v111, 1
    %v120 = vadd.s32 %v111, 2
    %vm121 = vcmp.ge.s32.totalorder %v120, 0
    %vm122 = vmand %vm119, %vm121
    %v123 = vlaneseq
    %v124 = vshrl.u32 %v123, 7
    %v125 = vsub.s32 0, %v124
    %v126 = vrot.slane %v118, %v125
    %v127 = vsel %vm122, %v126, %v117
    %v128 = vpack.c.bf16 %v127, %v127
    %v129 = vld [vmem:[#allocation9] sm:$0xf]
    %v130 = vld [vmem:[#allocation9 + $0x4] sm:$0xf]
    %v131 = vld [vmem:[#allocation9 + $0x8] sm:$0xf]
    %v132 = vld [vmem:[#allocation9 + $0xc] sm:$0xf]
    %v133 = vld [vmem:[#allocation9 + $0x10] sm:$0xf]
    %v134 = vld [vmem:[#allocation9 + $0x14] sm:$0xf]
    %v135 = vld [vmem:[#allocation9 + $0x18] sm:$0xf]
    %v136 = vld [vmem:[#allocation9 + $0x1c] sm:$0xf]
    %v137 = vld [vmem:[#allocation9 + $0x20] sm:$0xf]
    %v138 = vld [vmem:[#allocation9 + $0x24] sm:$0xf]
    %v139 = vld [vmem:[#allocation9 + $0x28] sm:$0xf]
    %v140 = vld [vmem:[#allocation9 + $0x2c] sm:$0xf]
    %v141 = vld [vmem:[#allocation9 + $0x30] sm:$0xf]
    %v142 = vld [vmem:[#allocation9 + $0x34] sm:$0xf]
    %v143 = vld [vmem:[#allocation9 + $0x38] sm:$0xf]
    %v144 = vld [vmem:[#allocation9 + $0x3c] sm:$0xf]
    %v145 = vadd.f32 %v127, 0.0
    %v146 = vld [vmem:[#allocation2 + $0x8] sm:$0xff]
    %vm147 = vcmp.le.s32.totalorder %v111, 7
    %vm148 = vmand %vm113, %vm147
    %v149 = vsel %vm148, %v146, 0.0
    %v150 = vld [vmem:[#allocation2 + $0x9] sm:$0x1]
    %vm151 = vcmp.ge.s32.totalorder %v120, 1
    %vm152 = vmand %vm119, %vm151
    %v153 = vlaneseq
    %v154 = vshrl.u32 %v153, 7
    %v155 = vsub.s32 0, %v154
    %v156 = vrot.slane %v150, %v155
    %v157 = vsel %vm152, %v156, %v149
    %v158 = vpack.c.bf16 %v157, %v157
    %s159 = scalar_lea.vmem [#allocation9], 64
    %v160 = vld [vmem:[%s159] sm:$0xf]
    %v161 = vld [vmem:[%s159 + $0x4] sm:$0xf]
    %v162 = vld [vmem:[%s159 + $0x8] sm:$0xf]
    %v163 = vld [vmem:[%s159 + $0xc] sm:$0xf]
    %v164 = vld [vmem:[%s159 + $0x10] sm:$0xf]
    %v165 = vld [vmem:[%s159 + $0x14] sm:$0xf]
    %v166 = vld [vmem:[%s159 + $0x18] sm:$0xf]
    %v167 = vld [vmem:[%s159 + $0x1c] sm:$0xf]
    %v168 = vld [vmem:[%s159 + $0x20] sm:$0xf]
    %v169 = vld [vmem:[%s159 + $0x24] sm:$0xf]
    %v170 = vld [vmem:[%s159 + $0x28] sm:$0xf]
    %v171 = vld [vmem:[%s159 + $0x2c] sm:$0xf]
    %v172 = vld [vmem:[%s159 + $0x30] sm:$0xf]
    %v173 = vld [vmem:[%s159 + $0x34] sm:$0xf]
    %v174 = vld [vmem:[%s159 + $0x38] sm:$0xf]
    %v175 = vld [vmem:[%s159 + $0x3c] sm:$0xf]
    %v192 = vunpack.c.l.b16 %v160
    %v193 = vunpack.c.l.b16 %v161
    %v194 = vunpack.c.l.b16 %v162
    %v195 = vunpack.c.l.b16 %v163
    %v196 = vunpack.c.l.b16 %v164
    %v197 = vunpack.c.l.b16 %v165
    %v198 = vunpack.c.l.b16 %v166
    %v199 = vunpack.c.l.b16 %v167
    %v200 = vunpack.c.l.b16 %v168
    %v201 = vunpack.c.l.b16 %v169
    %v202 = vunpack.c.l.b16 %v170
    %v203 = vunpack.c.l.b16 %v171
    %v204 = vunpack.c.l.b16 %v172
    %v205 = vunpack.c.l.b16 %v173
    %v206 = vunpack.c.l.b16 %v174
    %v207 = vunpack.c.l.b16 %v175
    %v208 = vpack.c.b16 %v193, %v192
    %v209 = vpack.c.b16 %v195, %v194
    %v210 = vpack.c.b16 %v197, %v196
    %v211 = vpack.c.b16 %v199, %v198
    %v212 = vpack.c.b16 %v201, %v200
    %v213 = vpack.c.b16 %v203, %v202
    %v214 = vpack.c.b16 %v205, %v204
    %v215 = vpack.c.b16 %v207, %v206
    %224 = vmatprep.subr.bf16.mxu0 0
    %225 = vmatpush1.bf16.msra.mxu0 %v208
    %226 = vmatprep.subr.bf16.mxu0 0
    %227 = vmatpush1.bf16.msra.mxu0 %v209
    %228 = vmatprep.subr.bf16.mxu0 0
    %229 = vmatpush1.bf16.msra.mxu0 %v210
    %230 = vmatprep.subr.bf16.mxu0 0
    %231 = vmatpush1.bf16.msra.mxu0 %v211
    %232 = vmatprep.subr.bf16.mxu0 0
    %233 = vmatpush1.bf16.msra.mxu0 %v212
    %234 = vmatprep.subr.bf16.mxu0 0
    %235 = vmatpush1.bf16.msra.mxu0 %v213
    %236 = vmatprep.subr.bf16.mxu0 0
    %237 = vmatpush1.bf16.msra.mxu0 %v214
    %238 = vmatprep.subr.bf16.mxu0 0
    %239 = vmatpush1.bf16.msra.mxu0 %v215
    %240 = vmatprep.subr.bf16.mxu0 0
    %241 = vmatpush1.bf16.msra.mxu0 0
    %242 = vmatprep.subr.bf16.mxu0 0
    %243 = vmatpush1.bf16.msra.mxu0 0
    %244 = vmatprep.subr.bf16.mxu0 0
    %245 = vmatpush1.bf16.msra.mxu0 0
    %246 = vmatprep.subr.bf16.mxu0 0
    %247 = vmatpush1.bf16.msra.mxu0 0
    %248 = vmatprep.subr.bf16.mxu0 0
    %249 = vmatpush1.bf16.msra.mxu0 0
    %250 = vmatprep.subr.bf16.mxu0 0
    %251 = vmatpush1.bf16.msra.mxu0 0
    %252 = vmatprep.subr.bf16.mxu0 0
    %253 = vmatpush1.bf16.msra.mxu0 0
    %254 = vmatprep.subr.bf16.mxu0 0
    %255 = vmatpush1.bf16.msra.mxu0 0
    %256 = vmatprep.mubr.bf16.mxu0 0
    %257 = vmatmul.mubr.bf16.gmra.mrb[0].mxu0 %v158
    %v258 = vpop.f32.mrb[0].mxu0
    %v259 = vadd.f32 0.0, %v258
    %v260 = vpop.f32.mrb[0].mxu0
    %v261 = vpop.f32.mrb[0].mxu0
    %v262 = vpop.f32.mrb[0].mxu0
    %263 = vdwg.mxu0
    %v280 = vunpack.c.l.b16 %v129
    %v281 = vunpack.c.l.b16 %v130
    %v282 = vunpack.c.l.b16 %v131
    %v283 = vunpack.c.l.b16 %v132
    %v284 = vunpack.c.l.b16 %v133
    %v285 = vunpack.c.l.b16 %v134
    %v286 = vunpack.c.l.b16 %v135
    %v287 = vunpack.c.l.b16 %v136
    %v288 = vunpack.c.l.b16 %v137
    %v289 = vunpack.c.l.b16 %v138
    %v290 = vunpack.c.l.b16 %v139
    %v291 = vunpack.c.l.b16 %v140
    %v292 = vunpack.c.l.b16 %v141
    %v293 = vunpack.c.l.b16 %v142
    %v294 = vunpack.c.l.b16 %v143
    %v295 = vunpack.c.l.b16 %v144
    %v296 = vpack.c.b16 %v281, %v280
    %v297 = vpack.c.b16 %v283, %v282
    %v298 = vpack.c.b16 %v285, %v284
    %v299 = vpack.c.b16 %v287, %v286
    %v300 = vpack.c.b16 %v289, %v288
    %v301 = vpack.c.b16 %v291, %v290
    %v302 = vpack.c.b16 %v293, %v292
    %v303 = vpack.c.b16 %v295, %v294
    %312 = vmatprep.subr.bf16.mxu0 0
    %313 = vmatpush1.bf16.msra.mxu0 %v296
    %314 = vmatprep.subr.bf16.mxu0 0
    %315 = vmatpush1.bf16.msra.mxu0 %v297
    %316 = vmatprep.subr.bf16.mxu0 0
    %317 = vmatpush1.bf16.msra.mxu0 %v298
    %318 = vmatprep.subr.bf16.mxu0 0
    %319 = vmatpush1.bf16.msra.mxu0 %v299
    %320 = vmatprep.subr.bf16.mxu0 0
    %321 = vmatpush1.bf16.msra.mxu0 %v300
    %322 = vmatprep.subr.bf16.mxu0 0
    %323 = vmatpush1.bf16.msra.mxu0 %v301
    %324 = vmatprep.subr.bf16.mxu0 0
    %325 = vmatpush1.bf16.msra.mxu0 %v302
    %326 = vmatprep.subr.bf16.mxu0 0
    %327 = vmatpush1.bf16.msra.mxu0 %v303
    %328 = vmatprep.subr.bf16.mxu0 0
    %329 = vmatpush1.bf16.msra.mxu0 0
    %330 = vmatprep.subr.bf16.mxu0 0
    %331 = vmatpush1.bf16.msra.mxu0 0
    %332 = vmatprep.subr.bf16.mxu0 0
    %333 = vmatpush1.bf16.msra.mxu0 0
    %334 = vmatprep.subr.bf16.mxu0 0
    %335 = vmatpush1.bf16.msra.mxu0 0
    %336 = vmatprep.subr.bf16.mxu0 0
    %337 = vmatpush1.bf16.msra.mxu0 0
    %338 = vmatprep.subr.bf16.mxu0 0
    %339 = vmatpush1.bf16.msra.mxu0 0
    %340 = vmatprep.subr.bf16.mxu0 0
    %341 = vmatpush1.bf16.msra.mxu0 0
    %342 = vmatprep.subr.bf16.mxu0 0
    %343 = vmatpush1.bf16.msra.mxu0 0
    %344 = vmatprep.mubr.bf16.mxu0 0
    %345 = vmatmul.mubr.bf16.gmra.mrb[0].mxu0 %v128
    %v346 = vpop.f32.mrb[0].mxu0
    %v347 = vadd.f32 %v259, %v346
    %v348 = vpop.f32.mrb[0].mxu0
    %v349 = vpop.f32.mrb[0].mxu0
    %v350 = vpop.f32.mrb[0].mxu0
    %351 = vdwg.mxu0
    %v352 = vld [vmem:[#allocation2 + $0x9] sm:$0xff]
    %v353 = vadd.s32 %v111, 1
    %vm354 = vcmp.le.s32.totalorder %v353, 7
    %vm355 = vmand %vm113, %vm354
    %v356 = vsel %vm355, %v352, 0.0
    %v357 = vld [vmem:[#allocation2 + $0xa] sm:$0x1]
    %vm358 = vcmp.ge.s32.totalorder %v120, 2
    %vm359 = vmand %vm119, %vm358
    %v360 = vlaneseq
    %v361 = vshrl.u32 %v360, 7
    %v362 = vsub.s32 0, %v361
    %v363 = vrot.slane %v357, %v362
    %v364 = vsel %vm359, %v363, %v356
    %v365 = vpack.c.bf16 %v364, %v364
    %s366 = scalar_lea.vmem [#allocation9], 128
    %v367 = vld [vmem:[%s366] sm:$0xf]
    %v368 = vld [vmem:[%s366 + $0x4] sm:$0xf]
    %v369 = vld [vmem:[%s366 + $0x8] sm:$0xf]
    %v370 = vld [vmem:[%s366 + $0xc] sm:$0xf]
    %v371 = vld [vmem:[%s366 + $0x10] sm:$0xf]
    %v372 = vld [vmem:[%s366 + $0x14] sm:$0xf]
    %v373 = vld [vmem:[%s366 + $0x18] sm:$0xf]
    %v374 = vld [vmem:[%s366 + $0x1c] sm:$0xf]
    %v375 = vld [vmem:[%s366 + $0x20] sm:$0xf]
    %v376 = vld [vmem:[%s366 + $0x24] sm:$0xf]
    %v377 = vld [vmem:[%s366 + $0x28] sm:$0xf]
    %v378 = vld [vmem:[%s366 + $0x2c] sm:$0xf]
    %v379 = vld [vmem:[%s366 + $0x30] sm:$0xf]
    %v380 = vld [vmem:[%s366 + $0x34] sm:$0xf]
    %v381 = vld [vmem:[%s366 + $0x38] sm:$0xf]
    %v382 = vld [vmem:[%s366 + $0x3c] sm:$0xf]
    %v399 = vunpack.c.l.b16 %v367
    %v400 = vunpack.c.l.b16 %v368
    %v401 = vunpack.c.l.b16 %v369
    %v402 = vunpack.c.l.b16 %v370
    %v403 = vunpack.c.l.b16 %v371
    %v404 = vunpack.c.l.b16 %v372
    %v405 = vunpack.c.l.b16 %v373
    %v406 = vunpack.c.l.b16 %v374
    %v407 = vunpack.c.l.b16 %v375
    %v408 = vunpack.c.l.b16 %v376
    %v409 = vunpack.c.l.b16 %v377
    %v410 = vunpack.c.l.b16 %v378
    %v411 = vunpack.c.l.b16 %v379
    %v412 = vunpack.c.l.b16 %v380
    %v413 = vunpack.c.l.b16 %v381
    %v414 = vunpack.c.l.b16 %v382
    %v415 = vpack.c.b16 %v400, %v399
    %v416 = vpack.c.b16 %v402, %v401
    %v417 = vpack.c.b16 %v404, %v403
    %v418 = vpack.c.b16 %v406, %v405
    %v419 = vpack.c.b16 %v408, %v407
    %v420 = vpack.c.b16 %v410, %v409
    %v421 = vpack.c.b16 %v412, %v411
    %v422 = vpack.c.b16 %v414, %v413
    %431 = vmatprep.subr.bf16.mxu0 0
    %432 = vmatpush1.bf16.msra.mxu0 %v415
    %433 = vmatprep.subr.bf16.mxu0 0
    %434 = vmatpush1.bf16.msra.mxu0 %v416
    %435 = vmatprep.subr.bf16.mxu0 0
    %436 = vmatpush1.bf16.msra.mxu0 %v417
    %437 = vmatprep.subr.bf16.mxu0 0
    %438 = vmatpush1.bf16.msra.mxu0 %v418
    %439 = vmatprep.subr.bf16.mxu0 0
    %440 = vmatpush1.bf16.msra.mxu0 %v419
    %441 = vmatprep.subr.bf16.mxu0 0
    %442 = vmatpush1.bf16.msra.mxu0 %v420
    %443 = vmatprep.subr.bf16.mxu0 0
    %444 = vmatpush1.bf16.msra.mxu0 %v421
    %445 = vmatprep.subr.bf16.mxu0 0
    %446 = vmatpush1.bf16.msra.mxu0 %v422
    %447 = vmatprep.subr.bf16.mxu0 0
    %448 = vmatpush1.bf16.msra.mxu0 0
    %449 = vmatprep.subr.bf16.mxu0 0
    %450 = vmatpush1.bf16.msra.mxu0 0
    %451 = vmatprep.subr.bf16.mxu0 0
    %452 = vmatpush1.bf16.msra.mxu0 0
    %453 = vmatprep.subr.bf16.mxu0 0
    %454 = vmatpush1.bf16.msra.mxu0 0
    %455 = vmatprep.subr.bf16.mxu0 0
    %456 = vmatpush1.bf16.msra.mxu0 0
    %457 = vmatprep.subr.bf16.mxu0 0
    %458 = vmatpush1.bf16.msra.mxu0 0
    %459 = vmatprep.subr.bf16.mxu0 0
    %460 = vmatpush1.bf16.msra.mxu0 0
    %461 = vmatprep.subr.bf16.mxu0 0
    %462 = vmatpush1.bf16.msra.mxu0 0
    %463 = vmatprep.mubr.bf16.mxu0 0
    %464 = vmatmul.mubr.bf16.gmra.mrb[0].mxu0 %v365
    %v465 = vpop.f32.mrb[0].mxu0
    %v466 = vadd.f32 0.0, %v465
    %v467 = vpop.f32.mrb[0].mxu0
    %v468 = vpop.f32.mrb[0].mxu0
    %v469 = vpop.f32.mrb[0].mxu0
    %470 = vdwg.mxu0
    %v471 = vadd.f32 %v347, %v466
    %v472 = vld [vmem:[#allocation2 + $0xa] sm:$0xff]
    %vm473 = vcmp.le.s32.totalorder %v120, 7
    %vm474 = vmand %vm113, %vm473
    %v475 = vsel %vm474, %v472, 0.0
    %v476 = vld [vmem:[#allocation2 + $0xb] sm:$0x1]
    %vm477 = vcmp.ge.s32.totalorder %v120, 3
    %vm478 = vmand %vm119, %vm477
    %v479 = vlaneseq
    %v480 = vshrl.u32 %v479, 7
    %v481 = vsub.s32 0, %v480
    %v482 = vrot.slane %v476, %v481
    %v483 = vsel %vm478, %v482, %v475
    %v484 = vpack.c.bf16 %v483, %v483
    %s485 = scalar_lea.vmem [#allocation9], 192
    %v486 = vld [vmem:[%s485] sm:$0xf]
    %v487 = vld [vmem:[%s485 + $0x4] sm:$0xf]
    %v488 = vld [vmem:[%s485 + $0x8] sm:$0xf]
    %v489 = vld [vmem:[%s485 + $0xc] sm:$0xf]
    %v490 = vld [vmem:[%s485 + $0x10] sm:$0xf]
    %v491 = vld [vmem:[%s485 + $0x14] sm:$0xf]
    %v492 = vld [vmem:[%s485 + $0x18] sm:$0xf]
    %v493 = vld [vmem:[%s485 + $0x1c] sm:$0xf]
    %v494 = vld [vmem:[%s485 + $0x20] sm:$0xf]
    %v495 = vld [vmem:[%s485 + $0x24] sm:$0xf]
    %v496 = vld [vmem:[%s485 + $0x28] sm:$0xf]
    %v497 = vld [vmem:[%s485 + $0x2c] sm:$0xf]
    %v498 = vld [vmem:[%s485 + $0x30] sm:$0xf]
    %v499 = vld [vmem:[%s485 + $0x34] sm:$0xf]
    %v500 = vld [vmem:[%s485 + $0x38] sm:$0xf]
    %v501 = vld [vmem:[%s485 + $0x3c] sm:$0xf]
    %v518 = vunpack.c.l.b16 %v486
    %v519 = vunpack.c.l.b16 %v487
    %v520 = vunpack.c.l.b16 %v488
    %v521 = vunpack.c.l.b16 %v489
    %v522 = vunpack.c.l.b16 %v490
    %v523 = vunpack.c.l.b16 %v491
    %v524 = vunpack.c.l.b16 %v492
    %v525 = vunpack.c.l.b16 %v493
    %v526 = vunpack.c.l.b16 %v494
    %v527 = vunpack.c.l.b16 %v495
    %v528 = vunpack.c.l.b16 %v496
    %v529 = vunpack.c.l.b16 %v497
    %v530 = vunpack.c.l.b16 %v498
    %v531 = vunpack.c.l.b16 %v499
    %v532 = vunpack.c.l.b16 %v500
    %v533 = vunpack.c.l.b16 %v501
    %v534 = vpack.c.b16 %v519, %v518
    %v535 = vpack.c.b16 %v521, %v520
    %v536 = vpack.c.b16 %v523, %v522
    %v537 = vpack.c.b16 %v525, %v524
    %v538 = vpack.c.b16 %v527, %v526
    %v539 = vpack.c.b16 %v529, %v528
    %v540 = vpack.c.b16 %v531, %v530
    %v541 = vpack.c.b16 %v533, %v532
    %550 = vmatprep.subr.bf16.mxu0 0
    %551 = vmatpush1.bf16.msra.mxu0 %v534
    %552 = vmatprep.subr.bf16.mxu0 0
    %553 = vmatpush1.bf16.msra.mxu0 %v535
    %554 = vmatprep.subr.bf16.mxu0 0
    %555 = vmatpush1.bf16.msra.mxu0 %v536
    %556 = vmatprep.subr.bf16.mxu0 0
    %557 = vmatpush1.bf16.msra.mxu0 %v537
    %558 = vmatprep.subr.bf16.mxu0 0
    %559 = vmatpush1.bf16.msra.mxu0 %v538
    %560 = vmatprep.subr.bf16.mxu0 0
    %561 = vmatpush1.bf16.msra.mxu0 %v539
    %562 = vmatprep.subr.bf16.mxu0 0
    %563 = vmatpush1.bf16.msra.mxu0 %v540
    %564 = vmatprep.subr.bf16.mxu0 0
    %565 = vmatpush1.bf16.msra.mxu0 %v541
    %566 = vmatprep.subr.bf16.mxu0 0
    %567 = vmatpush1.bf16.msra.mxu0 0
    %568 = vmatprep.subr.bf16.mxu0 0
    %569 = vmatpush1.bf16.msra.mxu0 0
    %570 = vmatprep.subr.bf16.mxu0 0
    %571 = vmatpush1.bf16.msra.mxu0 0
    %572 = vmatprep.subr.bf16.mxu0 0
    %573 = vmatpush1.bf16.msra.mxu0 0
    %574 = vmatprep.subr.bf16.mxu0 0
    %575 = vmatpush1.bf16.msra.mxu0 0
    %576 = vmatprep.subr.bf16.mxu0 0
    %577 = vmatpush1.bf16.msra.mxu0 0
    %578 = vmatprep.subr.bf16.mxu0 0
    %579 = vmatpush1.bf16.msra.mxu0 0
    %580 = vmatprep.subr.bf16.mxu0 0
    %581 = vmatpush1.bf16.msra.mxu0 0
    %582 = vmatprep.mubr.bf16.mxu0 0
    %583 = vmatmul.mubr.bf16.gmra.mrb[0].mxu0 %v484
    %v584 = vpop.f32.mrb[0].mxu0
    %v585 = vadd.f32 0.0, %v584
    %v586 = vpop.f32.mrb[0].mxu0
    %v587 = vpop.f32.mrb[0].mxu0
    %v588 = vpop.f32.mrb[0].mxu0
    %589 = vdwg.mxu0
    %v590 = vadd.f32 %v471, %v585
    %v591 = vld [vmem:[#allocation11] sm:$0x1]
    %v593 = vlaneseq
    %v594 = vshrl.u32 %v593, 7
    %v595 = vsub.s32 0, %v594
    %v596 = vrot.slane %v591, %v595
    %v598 = vadd.f32 %v590, %v596
    %v599 = vmul.f32 %v598, 0.5
    %v600 = vmul.f32 %v598, 0.70710677
    %v601 = vand.u32 2147483647, %v600
    %v602 = vmul.f32 %v601, 0.3275911
    %v603 = vadd.f32 %v602, 1.0
    %v604 = vrcp.pop %v603
    %v605 = vmul.f32 1.0, %v604
    %v606 = vmul.f32 %v605, 1.0614054
    %v607 = vadd.f32 %v606, -1.4531521
    %v608 = vmul.f32 %v607, %v605
    %v609 = vadd.f32 %v608, 1.4214138
    %v610 = vmul.f32 %v609, %v605
    %v611 = vadd.f32 %v610, -0.28449672
    %v612 = vmul.f32 %v611, %v605
    %v613 = vadd.f32 %v612, 0.2548296
    %v614 = vmul.f32 %v613, %v605
    %v615 = vsub.f32 0.0, %v601
    %v616 = vmul.f32 %v615, %v601
    %v617 = vmul.f32 %v616, 1.442695
    %v618 = vpow.pop %v617
    %v619 = vmul.f32 %v614, %v618
    %v620 = vsub.f32 1.0, %v619
    %vm621 = vcmp.ge.f32.partialorder %v600, 0.0
    %v622 = vsub.f32 0.0, %v620
    %v623 = vsel %vm621, %v620, %v622
    %v624 = vadd.f32 %v623, 1.0
    %v625 = vmul.f32 %v599, %v624
    %626 = vst [vmem:[#allocation13] sm:$0xff] %v625
    %627 = vst [vmem:[#allocation12] sm:$0xff] %v145
    // Predicated region
    $region42: #{tpu_custom_call.1} parent=1 // pred_check
      _
    $region43: #{tpu_custom_call.1} parent=1 // pred_check_branch
      %629 = sbr.rel (0) target = $region45
    $region44: #{tpu_custom_call.1} parent=1 // pred_region
      %s631 = ssub.s32 128, 128
      %632 = vsyncadd [#allocation5], %s631
      %s634 = sshll.u32 [#allocation12], 4
      %s635 = int_to_ptr.vmem [resolvable:$true] %s634
      %637 = dma.vmem_to_hbm [thread:$0]  %s635, 128, %s5, [#allocation5]
    $region45: #{tpu_custom_call.1} parent=1 // pred_fallthru
      _
    // Predicated region
    $region46: #{tpu_custom_call.1} parent=1 // pred_check
      _
    $region47: #{tpu_custom_call.1} parent=1 // pred_check_branch
      %639 = sbr.rel (0) target = $region49
    $region48: #{tpu_custom_call.1} parent=1 // pred_region
      %s641 = ssub.s32 128, 128
      %642 = vsyncadd [#allocation14], %s641
      %s644 = sshll.u32 [#allocation13], 4
      %s645 = int_to_ptr.vmem [resolvable:$true] %s644
      %647 = dma.vmem_to_hbm [thread:$0]  %s645, 128, %s6, [#allocation14]
    $region49: #{tpu_custom_call.1} parent=1 // pred_fallthru
      _
    // Predicated region
    $region50: #{tpu_custom_call.1} parent=1 // pred_check
      _
    $region51: #{tpu_custom_call.1} parent=1 // pred_check_branch
      %649 = sbr.rel (0) target = $region53
    $region52: #{tpu_custom_call.1} parent=1 // pred_region
      %650 = dma.done [#allocation5], 128
    $region53: #{tpu_custom_call.1} parent=1 // pred_fallthru
      _
    // Predicated region
    $region54: #{tpu_custom_call.1} parent=1 // pred_check
      _
    $region55: #{tpu_custom_call.1} parent=1 // pred_check_branch
      %652 = sbr.rel (0) target = $region57
    $region56: #{tpu_custom_call.1} parent=1 // pred_region
      %653 = dma.done [#allocation14], 128
    $region57: #{tpu_custom_call.1} parent=1 // pred_fallthru
      _
    %654 = vsyncpa [#allocation4], 1
    %655 = vsyncpa [#allocation7], 1
    %656 = vsyncpa [#allocation10], 1
    %657 = vsyncpa [#allocation5], 1
    %658 = vsyncpa [#allocation14], 1

</llo_original>
